<compile_context>
chip_gen: v7x
topology: tpu7x:2x2x1
jax: 0.10.0
libtpu: 0.0.40
codegen_flags: <defaults>
</compile_context>

<pallas_src>
import functools

import jax
import jax.numpy as jnp
from jax.experimental import pallas as pl
from jax.experimental.pallas import tpu as pltpu


def _coors_norm_kernel(scale_ref, x_ref, o_ref, *, eps: float, d: int):
    # x_ref: (D, tile_n) tile in VMEM (D in sublanes, points in lanes).
    # scale_ref: (1,) f32 scalar in SMEM.
    x = x_ref[...].astype(jnp.float32)

    # D (=3) explicit squares + adds on the VPU — tiny contraction, never
    # route it through the MXU or an XLU transpose.
    sq = x[0:1, :] * x[0:1, :]
    for k in range(1, d):
        sq = sq + x[k : k + 1, :] * x[k : k + 1, :]

    # min(rsqrt(sq), 1/eps) == 1 / max(sqrt(sq), eps)  (including sq == 0).
    inv = jnp.minimum(jax.lax.rsqrt(sq), jnp.float32(1.0 / eps))
    factor = inv * scale_ref[0]                  # (1, tile_n): scale fused here
    o_ref[...] = (x * factor).astype(o_ref.dtype)


def coors_norm_soa(coors_dm: jax.Array, scale: jax.Array, *, eps: float = 1e-8,
                   col_tile: int = 65536) -> jax.Array:
    """CoorsNorm on SoA-layout coords.

    coors_dm: (D, M) array — points along the lane axis. Returns (D, M).
    This is the HBM-traffic-optimal entry point (no relayout around the call).
    """
    D, M = coors_dm.shape

    # Large lane tiles (multiple of 128); clamp so tiny inputs get a single
    # grid step with no oversized VMEM buffer. col_tile=65536 keeps all four
    # live buffers (in+out, double-buffered, 3->8 sublane pad) at 8 MiB —
    # under every generation's default scoped VMEM limit (v5e 16 MiB,
    # v6e/v7x 32 MiB).
    tile_n = max(128, min(col_tile, pl.cdiv(M, 128) * 128))
    grid = (pl.cdiv(M, tile_n),)                 # ragged tail clipped by Pallas

    scale = scale.astype(jnp.float32).reshape(1)
    kernel = functools.partial(_coors_norm_kernel, eps=eps, d=D)

    itemsize = jnp.dtype(coors_dm.dtype).itemsize
    cost = pl.CostEstimate(
        flops=7 * M,                              # squares, adds, min, scale-mul
        transcendentals=M,                        # one rsqrt per point
        bytes_accessed=2 * M * D * itemsize,      # read coords + write coords
    )

    return pl.pallas_call(
        kernel,
        out_shape=jax.ShapeDtypeStruct((D, M), coors_dm.dtype),
        grid=grid,
        in_specs=[
            pl.BlockSpec(memory_space=pltpu.MemorySpace.SMEM),   # scale (1,)
            pl.BlockSpec((D, tile_n), lambda i: (0, i)),         # coords tile
        ],
        out_specs=pl.BlockSpec((D, tile_n), lambda i: (0, i)),
        cost_estimate=cost,
        compiler_params=pltpu.CompilerParams(
            # TODO(synk): if xprof shows one v7x TC idle, try CORE_PARALLEL
            # or an explicit leading num_cores grid axis.
            dimension_semantics=("parallel",)),
    )(scale, coors_dm)


def coors_norm(coors: jax.Array, scale: jax.Array, *, eps: float = 1e-8,
               col_tile: int = 65536) -> jax.Array:
    """Pallas implementation of CoorsNorm.forward on (..., D) coords.

    Keeps the module's AoS interface; the two relayout transposes are plain
    XLA ops — keep the whole call under one jax.jit so they are scheduled
    together with the custom call. Prefer coors_norm_soa when the surrounding
    model can carry coords as (D, M).
    """
    orig_shape = coors.shape
    D = orig_shape[-1]
    M = 1
    for s in orig_shape[:-1]:
        M *= s

    xt = coors.reshape(M, D).T                   # (D, M) lane-dense layout
    out_t = coors_norm_soa(xt, scale, eps=eps, col_tile=col_tile)
    return out_t.T.reshape(orig_shape)


def coors_norm_ref(coors, scale, eps=1e-8):
    x = coors.astype(jnp.float32)
    norm = jnp.linalg.norm(x, axis=-1, keepdims=True)
    normed = x / jnp.maximum(norm, eps)
    return (normed * scale.astype(jnp.float32)).astype(coors.dtype)


if __name__ == "__main__":
    key = jax.random.PRNGKey(0)

    # Small shape consistent with the module: batch=2, seq=8, coord dim=3.
    B, N, D = 2, 8, 3
    coors = jax.random.normal(key, (B, N, D), dtype=jnp.float32)
    coors = coors.at[0, 0].set(0.0)              # exercise the eps clamp path

    scale_init = 1.0                             # matches __init__ default
    scale = jnp.full((1,), scale_init, dtype=jnp.float32)

    # Whole path (relayout + kernel) under one jit, per perf review.
    coors_norm_jit = jax.jit(functools.partial(coors_norm, eps=1e-8))

    out = jax.block_until_ready(coors_norm_jit(coors, scale))
    ref = coors_norm_ref(coors, scale, eps=1e-8)
    assert out.shape == coors.shape
    assert out.dtype == coors.dtype
    assert jnp.allclose(out, ref, atol=1e-5, rtol=1e-5), "mismatch vs reference"

    # Ragged boundary case: M = 2*333 = 666 points is not a multiple of 128,
    # so the last lane tile is clipped by Pallas (no wrapper-side padding).
    coors2 = jax.random.normal(jax.random.PRNGKey(0), (2, 333, 3),
                               dtype=jnp.float32)
    out2 = jax.block_until_ready(coors_norm_jit(coors2, scale))
    ref2 = coors_norm_ref(coors2, scale, eps=1e-8)
    assert jnp.allclose(out2, ref2, atol=1e-5, rtol=1e-5), "ragged mismatch"

    # SoA entry point (no relayout): same math on a (D, M) slab.
    coors3 = jax.random.normal(jax.random.PRNGKey(1), (3, 500),
                               dtype=jnp.float32)
    out3 = jax.block_until_ready(
        jax.jit(functools.partial(coors_norm_soa, eps=1e-8))(coors3, scale))
    ref3 = coors_norm_ref(coors3.T, scale, eps=1e-8).T
    assert jnp.allclose(out3, ref3, atol=1e-5, rtol=1e-5), "SoA mismatch"

    print("KERNEL_OK")
</pallas_src>

<mosaic_0001>
module attributes {stable_mosaic.version = 11 : i64} {
  func.func @_coors_norm_kernel(%arg0: i32, %arg1: memref<1xf32, #tpu.memory_space<smem>>, %arg2: memref<3x128xf32, #tpu.memory_space<vmem>>, %arg3: memref<3x128xf32, #tpu.memory_space<vmem>>) attributes {dimension_semantics = [#tpu.dimension_semantics<parallel>], iteration_bounds = array<i64: 1>, scalar_prefetch = 0 : i64, scratch_operands = 0 : i64, tpu.core_type = #tpu.core_type<tc>, window_params = [{transform_indices = @transform_0, window_bounds = array<i64: 1>}, {transform_indices = @transform_1, window_bounds = array<i64: 3, 128>}, {transform_indices = @transform_2, window_bounds = array<i64: 3, 128>}]} {
    %c0 = arith.constant 0 : index
    %c0_0 = arith.constant 0 : index
    %0 = vector.load %arg2[%c0, %c0_0] : memref<3x128xf32, #tpu.memory_space<vmem>>, vector<3x128xf32>
    %1 = vector.extract_strided_slice %0 {offsets = [0, 0], sizes = [1, 128], strides = [1, 1]} : vector<3x128xf32> to vector<1x128xf32>
    %2 = vector.extract_strided_slice %0 {offsets = [0, 0], sizes = [1, 128], strides = [1, 1]} : vector<3x128xf32> to vector<1x128xf32>
    %3 = arith.mulf %1, %2 : vector<1x128xf32>
    %4 = vector.extract_strided_slice %0 {offsets = [1, 0], sizes = [1, 128], strides = [1, 1]} : vector<3x128xf32> to vector<1x128xf32>
    %5 = vector.extract_strided_slice %0 {offsets = [1, 0], sizes = [1, 128], strides = [1, 1]} : vector<3x128xf32> to vector<1x128xf32>
    %6 = arith.mulf %4, %5 : vector<1x128xf32>
    %7 = arith.addf %3, %6 : vector<1x128xf32>
    %8 = vector.extract_strided_slice %0 {offsets = [2, 0], sizes = [1, 128], strides = [1, 1]} : vector<3x128xf32> to vector<1x128xf32>
    %9 = vector.extract_strided_slice %0 {offsets = [2, 0], sizes = [1, 128], strides = [1, 1]} : vector<3x128xf32> to vector<1x128xf32>
    %10 = arith.mulf %8, %9 : vector<1x128xf32>
    %11 = arith.addf %7, %10 : vector<1x128xf32>
    %12 = math.rsqrt %11 : vector<1x128xf32>
    %cst = arith.constant 1.000000e+08 : f32
    %13 = vector.broadcast %cst : f32 to vector<1x128xf32>
    %14 = arith.minimumf %12, %13 : vector<1x128xf32>
    %c0_1 = arith.constant 0 : index
    %15 = memref.load %arg1[%c0_1] : memref<1xf32, #tpu.memory_space<smem>>
    %16 = vector.broadcast %15 : f32 to vector<1x128xf32>
    %17 = arith.mulf %14, %16 : vector<1x128xf32>
    %18 = vector.broadcast %17 : vector<1x128xf32> to vector<3x128xf32>
    %19 = arith.mulf %0, %18 : vector<3x128xf32>
    %c0_2 = arith.constant 0 : index
    %c0_3 = arith.constant 0 : index
    %20 = vector.load %arg3[%c0_2, %c0_3] : memref<3x128xf32, #tpu.memory_space<vmem>>, vector<3x128xf32>
    tpu.vector_store %arg3[%c0_2, %c0_3], %19 {strides = array<i32>} : memref<3x128xf32, #tpu.memory_space<vmem>>, vector<3x128xf32>,
    return
  }
  func.func @transform_0(%arg0: i32) -> i32 {
    %c0_i32 = arith.constant 0 : i32
    %c0_i32_0 = arith.constant 0 : i32
    return %c0_i32 : i32
  }
  func.func @transform_1(%arg0: i32) -> (i32, i32) {
    %c0_i32 = arith.constant 0 : i32
    %c0_i32_0 = arith.constant 0 : i32
    return %c0_i32, %arg0 : i32, i32
  }
  func.func @transform_2(%arg0: i32) -> (i32, i32) {
    %c0_i32 = arith.constant 0 : i32
    %c0_i32_0 = arith.constant 0 : i32
    return %c0_i32, %arg0 : i32, i32
  }
}

</mosaic_0001>

<llo_original>
// kernel: coors_norm.1
$region0: #{coors_norm.1}
  #allocation0 [shape = 'u32[]', space=smem, size = 0x4, offset = 0x4, fixed_abs, tag = 'smem constant byte address 0x4 - core index']
  #allocation1 [shape = 'u32[144,128]{1,0:T(1,128)}', space=vmem, size = 0x12000, scoped, tag = 'internal scratch']
  #allocation2 [shape = 'f32[1]{0:T(128)S(6)}', space=smem, size = 0x200, scoped, tag = 'scoped memory for coors_norm.1']
  %s0 = inlined_call_operand.<no memory space> [shape: f32[1], index: 0, kind: input, shape index: {}]
  %s1 = inlined_call_operand.vmem [shape: f32[3,16], index: 1, kind: input, shape index: {}]
  %s2 = inlined_call_operand.vmem [shape: f32[3,16], index: 2, kind: output, shape index: {}]
  %s3 = sld [smem:[#allocation0]]
  $region18: #{coors_norm.1} parent=0
    _
  %s5 = ssub.s32 1, %s3
  %s6 = scalar_select 0, %s5, %s3
  %7 = sst [smem:[#allocation2]] %s0
  // Predicated region
  $region2: #{coors_norm.1} parent=0 // pred_check
    _
  $region3: #{coors_norm.1} parent=0 // pred_check_branch
    %9 = sbr.rel (0) target = $region5
  $region4: #{coors_norm.1} parent=0 // pred_region
    _
  $region5: #{coors_norm.1} parent=0 // pred_fallthru
    _
  // Predicated region
  $region6: #{coors_norm.1} parent=0 // pred_check
    _
  $region7: #{coors_norm.1} parent=0 // pred_check_branch
    %11 = sbr.rel (0) target = $region9
  $region8: #{coors_norm.1} parent=0 // pred_region
    _
  $region9: #{coors_norm.1} parent=0 // pred_fallthru
    _
  %v12 = vld [vmem:[%s1] sm:$0x7]
  %v13 = vmul.f32 %v12, %v12
  %v15 = vrot.slane %v13, 1
  %v17 = vadd.f32 %v13, %v15
  %v18 = vrot.slane %v13, 2
  %v20 = vadd.f32 %v17, %v18
  %v21 = vrsqrt.pop %v20
  %v22 = vmin.f32 %v21, 1e+08
  %s23 = sld [smem:[#allocation2]]
  %v24 = vstv %s23
  %v25 = vmul.f32 %v22, %v24
  %v26 = vlaneseq
  %v27 = vshrl.u32 %v26, 7
  %v28 = vsub.s32 0, %v27
  %v29 = vrot.slane %v25, %v28
  %v30 = vmul.f32 %v12, %v29
  %31 = vst [vmem:[%s2] sm:$0x7] %v30
  // Predicated region
  $region10: #{coors_norm.1} parent=0 // pred_check
    _
  $region11: #{coors_norm.1} parent=0 // pred_check_branch
    %33 = sbr.rel (0) target = $region13
  $region12: #{coors_norm.1} parent=0 // pred_region
    _
  $region13: #{coors_norm.1} parent=0 // pred_fallthru
    _
  // Predicated region
  $region14: #{coors_norm.1} parent=0 // pred_check
    _
  $region15: #{coors_norm.1} parent=0 // pred_check_branch
    %35 = sbr.rel (0) target = $region17
  $region16: #{coors_norm.1} parent=0 // pred_region
    _
  $region17: #{coors_norm.1} parent=0 // pred_fallthru
    _

</llo_original>
